<compile_context>
chip_gen: v6e
topology: v6e:2x2x1
jax: 0.10.0
libtpu: 0.0.40
codegen_flags: <defaults>
</compile_context>

<pallas_src>
import jax
import jax.numpy as jnp
from jax.experimental import pallas as pl
from jax.experimental.pallas import tpu as pltpu

EPS = 1e-9
_BN_SCALE = 1.0 / (1.0 + EPS) ** 0.5   # eval-mode BatchNorm1d: (x - 0) / sqrt(1 + eps)


def _dice(x, alpha):
    # Dice: p = sigmoid(BN(x)); out = p*x + alpha*(1-p)*x == x * (alpha + (1-alpha)*p)
    p = jax.nn.sigmoid(x * _BN_SCALE)
    return x * (alpha + (1.0 - alpha) * p)


def _activation_unit_kernel(q_ref, ub_ref, mask_ref,
                            w1qd_ref, w1ud_ref, w1p_ref, b1_ref, a1_ref,
                            w2_ref, b2_ref, a2_ref,
                            w3_ref, b3_ref,
                            out_ref):
    TB, S, D = ub_ref.shape
    H1 = w1qd_ref.shape[1]
    H2 = w2_ref.shape[1]

    q = q_ref[...]                                   # (TB, 1, D)  compute dtype
    ub = ub_ref[...]                                 # (TB, S, D)  compute dtype

    # Query-only part of the folded first Linear: computed once per batch row.
    qrow = jnp.dot(q.reshape(TB, D), w1qd_ref[...],
                   preferred_element_type=jnp.float32) + b1_ref[...]       # (TB, H1) f32

    # Behaviour-dependent part: two K=D dots with f32 accumulation (no concat buffer).
    ub2 = ub.reshape(TB * S, D)
    qub2 = (q * ub).reshape(TB * S, D)
    h = (jnp.dot(ub2, w1ud_ref[...], preferred_element_type=jnp.float32) +
         jnp.dot(qub2, w1p_ref[...], preferred_element_type=jnp.float32))  # (TB*S, H1)

    # Add the per-row query part via a stride-0 sublane broadcast over S.
    h = h.reshape(TB, S, H1) + qrow[:, None, :]
    h = _dice(h, a1_ref[...])                        # Dropout: identity (eval)

    h2 = jnp.dot(h.reshape(TB * S, H1).astype(w2_ref.dtype), w2_ref[...],
                 preferred_element_type=jnp.float32) + b2_ref[...]
    h2 = _dice(h2, a2_ref[...])                      # (TB*S, H2) f32

    # Final Linear(H2 -> 1) as a lane reduce -> lane-dense (TB, S) logits.
    logits = jnp.sum(h2.reshape(TB, S, H2) * w3_ref[...], axis=-1) + b3_ref[...]

    # In-kernel mask -> additive bias, then softmax over S (lane axis).
    logits = logits + (mask_ref[...] - 1.0) * 1e9
    m = jnp.max(logits, axis=-1, keepdims=True)
    e = jnp.exp(logits - m)
    denom = jnp.sum(e, axis=-1, keepdims=True)
    out_ref[...] = (e * pl.reciprocal(denom, approx=True)).astype(out_ref.dtype)


def activation_unit_forward(query, user_behavior, mask, params, *,
                            compute_dtype=jnp.bfloat16, max_tb=256):
    """query: (B,1,D), user_behavior: (B,S,D), mask: (B,S,1) -> (B,S,1) float32."""
    B, S, D = user_behavior.shape
    w1, b1, a1, w2, b2, a2, w3, b3 = params
    H1 = w1.shape[1]
    H2 = w2.shape[1]

    # Fold the first-layer weight:
    #   concat([q, ub, q-ub, q*ub]) @ W1
    #     = q @ (W1q + W1d) + ub @ (W1u - W1d) + (q*ub) @ W1p
    w1q, w1u, w1d, w1p = jnp.split(w1, 4, axis=0)
    w1qd = (w1q + w1d).astype(compute_dtype)              # (D, H1)  query-only part
    w1ud = (w1u - w1d).astype(compute_dtype)              # (D, H1)  ub part
    w1pp = w1p.astype(compute_dtype)                       # (D, H1)  q*ub part
    w2c = w2.astype(compute_dtype)                          # (H1, H2)
    qc = query.astype(compute_dtype)
    ubc = user_behavior.astype(compute_dtype)
    mask2 = mask.reshape(B, S).astype(jnp.float32)          # lane-dense mask

    # Pad S: always to a sublane multiple of 8; to a lane multiple of 128 only when
    # the inflation of the dominant (B,S,D) HBM stream stays <= 25%.
    s8 = -(-S // 8) * 8
    s128 = -(-S // 128) * 128
    Sp = s128 if 4 * s128 <= 5 * S else s8
    if Sp != S:
        ubc = jnp.pad(ubc, ((0, 0), (0, Sp - S), (0, 0)))
        mask2 = jnp.pad(mask2, ((0, 0), (0, Sp - S)))       # mask=0 -> bias -1e9 -> prob 0

    # Batch tile from a VMEM byte budget (keeps headroom on v7x's 64 MiB parts).
    isz = jnp.dtype(compute_dtype).itemsize
    per_row = (2 * Sp * D * isz          # double-buffered user_behavior block
               + Sp * D * isz            # q*ub
               + 3 * Sp * H1 * 4         # first-layer f32 accum / dice temps
               + 3 * Sp * H2 * 4         # second-layer f32 accum / dice temps
               + 8 * Sp * 4)             # logits / mask / softmax temps / output
    budget = 32 * 1024 * 1024
    tb = max(8, min(max_tb, int(budget // max(per_row, 1))))
    tb -= tb % 8
    if B <= tb:
        if B >= 16:
            # Guarantee >= 2 grid steps so v7x's two TensorCores both get work.
            tb = (((B + 1) // 2 + 7) // 8) * 8
        else:
            tb = B
    grid = (pl.cdiv(B, tb),)

    wbytes = (3 * D * H1 + H1 * H2) * isz + (2 * H1 + 2 * H2 + H2 + 1) * 4
    est = tb * per_row + 2 * wbytes
    vmem_limit = int(min(max(2 * est, 32 * 1024 * 1024), 60 * 1024 * 1024))

    def full_spec(shape):
        n = len(shape)
        return pl.BlockSpec(shape, lambda b, n=n: (0,) * n)

    in_specs = [
        pl.BlockSpec((tb, 1, D), lambda b: (b, 0, 0)),     # query
        pl.BlockSpec((tb, Sp, D), lambda b: (b, 0, 0)),    # user_behavior
        pl.BlockSpec((tb, Sp), lambda b: (b, 0)),          # mask (lane-dense)
        full_spec((D, H1)), full_spec((D, H1)), full_spec((D, H1)),   # W1 folded parts
        full_spec((1, H1)), full_spec((1, H1)),            # b1, alpha1
        full_spec((H1, H2)), full_spec((1, H2)), full_spec((1, H2)),  # W2, b2, alpha2
        full_spec((1, H2)), full_spec((1, 1)),             # W3 (pre-transposed), b3
    ]
    out_specs = pl.BlockSpec((tb, Sp), lambda b: (b, 0))

    out2d = pl.pallas_call(
        _activation_unit_kernel,
        out_shape=jax.ShapeDtypeStruct((B, Sp), jnp.float32),
        grid=grid,
        in_specs=in_specs,
        out_specs=out_specs,
        compiler_params=pltpu.CompilerParams(
            dimension_semantics=("parallel",),
            vmem_limit_bytes=vmem_limit),
    )(qc, ubc, mask2,
      w1qd, w1ud, w1pp, b1.reshape(1, H1), a1.reshape(1, H1),
      w2c, b2.reshape(1, H2), a2.reshape(1, H2),
      w3.reshape(1, H2), b3.reshape(1, 1))

    return out2d[:, :S, None]                              # (B, S, 1)


def reference_forward(query, user_behavior, mask, params):
    """Pure-JAX mirror of ActivationUnit.forward (eval-mode BN/Dropout)."""
    w1, b1, a1, w2, b2, a2, w3, b3 = params
    B, S, D = user_behavior.shape
    queries = jnp.broadcast_to(query, (B, S, D))
    x = jnp.concatenate(
        [queries, user_behavior, queries - user_behavior, queries * user_behavior],
        axis=-1).reshape(-1, 4 * D)

    def dice_ref(x, alpha):
        p = jax.nn.sigmoid(x * _BN_SCALE)
        return p * x + alpha * (1.0 - p) * x

    h = dice_ref(x @ w1 + b1, a1)
    h = dice_ref(h @ w2 + b2, a2)
    out = (h @ w3 + b3).reshape(B, S, 1)
    out = out - (1.0 - mask) * 1e9
    return jax.nn.softmax(out, axis=1)


if __name__ == "__main__":
    key = jax.random.PRNGKey(0)
    embedding_dim = 4
    D = embedding_dim * 2            # model_dim (query / behavior feature size)
    B, S = 2, 8
    fc_dims = (32, 16)               # first Linear input = embedding_dim * 4 * 2 = 4*D

    ks = jax.random.split(key, 12)

    def linear_init(kw, kb, fan_in, fan_out):
        bound = 1.0 / jnp.sqrt(jnp.float32(fan_in))
        w = jax.random.uniform(kw, (fan_in, fan_out), jnp.float32, -bound, bound)
        b = jax.random.uniform(kb, (fan_out,), jnp.float32, -bound, bound)
        return w, b

    w1, b1 = linear_init(ks[0], ks[1], 4 * D, fc_dims[0])
    a1 = 0.1 * jax.random.normal(ks[2], (fc_dims[0],), jnp.float32)  # Dice alpha (torch init=0)
    w2, b2 = linear_init(ks[3], ks[4], fc_dims[0], fc_dims[1])
    a2 = 0.1 * jax.random.normal(ks[5], (fc_dims[1],), jnp.float32)
    w3, b3 = linear_init(ks[6], ks[7], fc_dims[1], 1)
    params = (w1, b1, a1, w2, b2, a2, w3, b3)

    query = jax.random.normal(ks[8], (B, 1, D), jnp.float32)
    user_behavior = jax.random.normal(ks[9], (B, S, D), jnp.float32)
    lens = jnp.array([5, 8])
    mask = (jnp.arange(S)[None, :] < lens[:, None]).astype(jnp.float32)[..., None]  # (B,S,1)

    ref = reference_forward(query, user_behavior, mask, params)

    # f32 compute path: tight structural check (approx reciprocal is the only approximation).
    out_f32 = activation_unit_forward(query, user_behavior, mask, params,
                                      compute_dtype=jnp.float32)
    out_f32 = jax.block_until_ready(out_f32)
    assert out_f32.shape == (B, S, 1)
    assert jnp.allclose(out_f32, ref, atol=5e-3, rtol=0.0), (out_f32, ref)

    # Default path: bf16 matmul operands, f32 accumulation (MXU / HBM fast path).
    out = activation_unit_forward(query, user_behavior, mask, params)
    out = jax.block_until_ready(out)
    assert out.shape == (B, S, 1)
    assert jnp.allclose(out, ref, atol=5e-2, rtol=0.0), (out, ref)

    print("KERNEL_OK")
</pallas_src>

<mosaic_0001>
module attributes {stable_mosaic.version = 11 : i64} {
  func.func @_activation_unit_kernel(%arg0: i32, %arg1: memref<2x1x8xf32, #tpu.memory_space<vmem>>, %arg2: memref<2x8x8xf32, #tpu.memory_space<vmem>>, %arg3: memref<2x8xf32, #tpu.memory_space<vmem>>, %arg4: memref<8x32xf32, #tpu.memory_space<vmem>>, %arg5: memref<8x32xf32, #tpu.memory_space<vmem>>, %arg6: memref<8x32xf32, #tpu.memory_space<vmem>>, %arg7: memref<1x32xf32, #tpu.memory_space<vmem>>, %arg8: memref<1x32xf32, #tpu.memory_space<vmem>>, %arg9: memref<32x16xf32, #tpu.memory_space<vmem>>, %arg10: memref<1x16xf32, #tpu.memory_space<vmem>>, %arg11: memref<1x16xf32, #tpu.memory_space<vmem>>, %arg12: memref<1x16xf32, #tpu.memory_space<vmem>>, %arg13: memref<1x1xf32, #tpu.memory_space<vmem>>, %arg14: memref<2x8xf32, #tpu.memory_space<vmem>>) attributes {dimension_semantics = [#tpu.dimension_semantics<parallel>], iteration_bounds = array<i64: 1>, scalar_prefetch = 0 : i64, scratch_operands = 0 : i64, tpu.core_type = #tpu.core_type<tc>, window_params = [{transform_indices = @transform_0, window_bounds = array<i64: 2, 1, 8>}, {transform_indices = @transform_1, window_bounds = array<i64: 2, 8, 8>}, {transform_indices = @transform_2, window_bounds = array<i64: 2, 8>}, {pipeline_mode = #tpu.pipeline_mode<synchronous>, transform_indices = @transform_3, window_bounds = array<i64: 8, 32>}, {pipeline_mode = #tpu.pipeline_mode<synchronous>, transform_indices = @transform_4, window_bounds = array<i64: 8, 32>}, {pipeline_mode = #tpu.pipeline_mode<synchronous>, transform_indices = @transform_5, window_bounds = array<i64: 8, 32>}, {pipeline_mode = #tpu.pipeline_mode<synchronous>, transform_indices = @transform_6, window_bounds = array<i64: 1, 32>}, {pipeline_mode = #tpu.pipeline_mode<synchronous>, transform_indices = @transform_7, window_bounds = array<i64: 1, 32>}, {pipeline_mode = #tpu.pipeline_mode<synchronous>, transform_indices = @transform_8, window_bounds = array<i64: 32, 16>}, {pipeline_mode = #tpu.pipeline_mode<synchronous>, transform_indices = @transform_9, window_bounds = array<i64: 1, 16>}, {pipeline_mode = #tpu.pipeline_mode<synchronous>, transform_indices = @transform_10, window_bounds = array<i64: 1, 16>}, {pipeline_mode = #tpu.pipeline_mode<synchronous>, transform_indices = @transform_11, window_bounds = array<i64: 1, 16>}, {pipeline_mode = #tpu.pipeline_mode<synchronous>, transform_indices = @transform_12, window_bounds = array<i64: 1, 1>}, {transform_indices = @transform_13, window_bounds = array<i64: 2, 8>}]} {
    %c0 = arith.constant 0 : index
    %c0_0 = arith.constant 0 : index
    %c0_1 = arith.constant 0 : index
    %0 = vector.load %arg1[%c0, %c0_0, %c0_1] : memref<2x1x8xf32, #tpu.memory_space<vmem>>, vector<2x1x8xf32>
    %c0_2 = arith.constant 0 : index
    %c0_3 = arith.constant 0 : index
    %c0_4 = arith.constant 0 : index
    %1 = vector.load %arg2[%c0_2, %c0_3, %c0_4] : memref<2x8x8xf32, #tpu.memory_space<vmem>>, vector<2x8x8xf32>
    %2 = vector.shape_cast %0 : vector<2x1x8xf32> to vector<2x8xf32>
    %c0_5 = arith.constant 0 : index
    %c0_6 = arith.constant 0 : index
    %3 = vector.load %arg4[%c0_5, %c0_6] : memref<8x32xf32, #tpu.memory_space<vmem>>, vector<8x32xf32>
    %cst = arith.constant dense<0.000000e+00> : vector<2x32xf32>
    %4 = tpu.matmul %2, %3, %cst {dimension_numbers = #tpu.dot_dimension_numbers<[1], [0], [0], [1], [0, 0, 1, 1], [], []>} : vector<2x8xf32>, vector<8x32xf32>, vector<2x32xf32> -> vector<2x32xf32>
    %c0_7 = arith.constant 0 : index
    %c0_8 = arith.constant 0 : index
    %5 = vector.load %arg7[%c0_7, %c0_8] : memref<1x32xf32, #tpu.memory_space<vmem>>, vector<1x32xf32>
    %6 = vector.broadcast %5 : vector<1x32xf32> to vector<2x32xf32>
    %7 = arith.addf %4, %6 : vector<2x32xf32>
    %8 = vector.shape_cast %1 : vector<2x8x8xf32> to vector<16x8xf32>
    %9 = vector.broadcast %0 : vector<2x1x8xf32> to vector<2x8x8xf32>
    %10 = arith.mulf %9, %1 : vector<2x8x8xf32>
    %11 = vector.shape_cast %10 : vector<2x8x8xf32> to vector<16x8xf32>
    %c0_9 = arith.constant 0 : index
    %c0_10 = arith.constant 0 : index
    %12 = vector.load %arg5[%c0_9, %c0_10] : memref<8x32xf32, #tpu.memory_space<vmem>>, vector<8x32xf32>
    %cst_11 = arith.constant dense<0.000000e+00> : vector<16x32xf32>
    %13 = tpu.matmul %8, %12, %cst_11 {dimension_numbers = #tpu.dot_dimension_numbers<[1], [0], [0], [1], [0, 0, 1, 1], [], []>} : vector<16x8xf32>, vector<8x32xf32>, vector<16x32xf32> -> vector<16x32xf32>
    %c0_12 = arith.constant 0 : index
    %c0_13 = arith.constant 0 : index
    %14 = vector.load %arg6[%c0_12, %c0_13] : memref<8x32xf32, #tpu.memory_space<vmem>>, vector<8x32xf32>
    %cst_14 = arith.constant dense<0.000000e+00> : vector<16x32xf32>
    %15 = tpu.matmul %11, %14, %cst_14 {dimension_numbers = #tpu.dot_dimension_numbers<[1], [0], [0], [1], [0, 0, 1, 1], [], []>} : vector<16x8xf32>, vector<8x32xf32>, vector<16x32xf32> -> vector<16x32xf32>
    %16 = arith.addf %13, %15 : vector<16x32xf32>
    %17 = vector.shape_cast %16 : vector<16x32xf32> to vector<2x8x32xf32>
    %18 = vector.shape_cast %7 : vector<2x32xf32> to vector<2x1x32xf32>
    %19 = vector.broadcast %18 : vector<2x1x32xf32> to vector<2x8x32xf32>
    %20 = arith.addf %17, %19 : vector<2x8x32xf32>
    %c0_15 = arith.constant 0 : index
    %c0_16 = arith.constant 0 : index
    %21 = vector.load %arg8[%c0_15, %c0_16] : memref<1x32xf32, #tpu.memory_space<vmem>>, vector<1x32xf32>
    %cst_17 = arith.constant 1.000000e+00 : f32
    %22 = vector.broadcast %cst_17 : f32 to vector<2x8x32xf32>
    %23 = arith.mulf %20, %22 : vector<2x8x32xf32>
    %24 = arith.negf %23 : vector<2x8x32xf32>
    %25 = math.exp %24 : vector<2x8x32xf32>
    %cst_18 = arith.constant 1.000000e+00 : f32
    %26 = vector.broadcast %cst_18 : f32 to vector<2x8x32xf32>
    %27 = arith.addf %26, %25 : vector<2x8x32xf32>
    %28 = arith.divf %26, %27 : vector<2x8x32xf32>
    %cst_19 = arith.constant 1.000000e+00 : f32
    %29 = vector.broadcast %cst_19 : f32 to vector<1x32xf32>
    %30 = arith.subf %29, %21 : vector<1x32xf32>
    %31 = vector.shape_cast %30 : vector<1x32xf32> to vector<1x1x32xf32>
    %32 = vector.broadcast %31 : vector<1x1x32xf32> to vector<2x8x32xf32>
    %33 = arith.mulf %32, %28 : vector<2x8x32xf32>
    %34 = vector.shape_cast %21 : vector<1x32xf32> to vector<1x1x32xf32>
    %35 = vector.broadcast %34 : vector<1x1x32xf32> to vector<2x8x32xf32>
    %36 = arith.addf %35, %33 : vector<2x8x32xf32>
    %37 = arith.mulf %20, %36 : vector<2x8x32xf32>
    %38 = vector.shape_cast %37 : vector<2x8x32xf32> to vector<16x32xf32>
    %c0_20 = arith.constant 0 : index
    %c0_21 = arith.constant 0 : index
    %39 = vector.load %arg9[%c0_20, %c0_21] : memref<32x16xf32, #tpu.memory_space<vmem>>, vector<32x16xf32>
    %cst_22 = arith.constant dense<0.000000e+00> : vector<16x16xf32>
    %40 = tpu.matmul %38, %39, %cst_22 {dimension_numbers = #tpu.dot_dimension_numbers<[1], [0], [0], [1], [0, 0, 1, 1], [], []>} : vector<16x32xf32>, vector<32x16xf32>, vector<16x16xf32> -> vector<16x16xf32>
    %c0_23 = arith.constant 0 : index
    %c0_24 = arith.constant 0 : index
    %41 = vector.load %arg10[%c0_23, %c0_24] : memref<1x16xf32, #tpu.memory_space<vmem>>, vector<1x16xf32>
    %42 = vector.broadcast %41 : vector<1x16xf32> to vector<16x16xf32>
    %43 = arith.addf %40, %42 : vector<16x16xf32>
    %c0_25 = arith.constant 0 : index
    %c0_26 = arith.constant 0 : index
    %44 = vector.load %arg11[%c0_25, %c0_26] : memref<1x16xf32, #tpu.memory_space<vmem>>, vector<1x16xf32>
    %cst_27 = arith.constant 1.000000e+00 : f32
    %45 = vector.broadcast %cst_27 : f32 to vector<16x16xf32>
    %46 = arith.mulf %43, %45 : vector<16x16xf32>
    %47 = arith.negf %46 : vector<16x16xf32>
    %48 = math.exp %47 : vector<16x16xf32>
    %cst_28 = arith.constant 1.000000e+00 : f32
    %49 = vector.broadcast %cst_28 : f32 to vector<16x16xf32>
    %50 = arith.addf %49, %48 : vector<16x16xf32>
    %51 = arith.divf %49, %50 : vector<16x16xf32>
    %cst_29 = arith.constant 1.000000e+00 : f32
    %52 = vector.broadcast %cst_29 : f32 to vector<1x16xf32>
    %53 = arith.subf %52, %44 : vector<1x16xf32>
    %54 = vector.broadcast %53 : vector<1x16xf32> to vector<16x16xf32>
    %55 = arith.mulf %54, %51 : vector<16x16xf32>
    %56 = vector.broadcast %44 : vector<1x16xf32> to vector<16x16xf32>
    %57 = arith.addf %56, %55 : vector<16x16xf32>
    %58 = arith.mulf %43, %57 : vector<16x16xf32>
    %59 = vector.shape_cast %58 : vector<16x16xf32> to vector<2x8x16xf32>
    %c0_30 = arith.constant 0 : index
    %c0_31 = arith.constant 0 : index
    %60 = vector.load %arg12[%c0_30, %c0_31] : memref<1x16xf32, #tpu.memory_space<vmem>>, vector<1x16xf32>
    %61 = vector.shape_cast %60 : vector<1x16xf32> to vector<1x1x16xf32>
    %62 = vector.broadcast %61 : vector<1x1x16xf32> to vector<2x8x16xf32>
    %63 = arith.mulf %59, %62 : vector<2x8x16xf32>
    %cst_32 = arith.constant dense<0.000000e+00> : vector<2x8xf32>
    %64 = vector.multi_reduction <add>, %63, %cst_32 [2] : vector<2x8x16xf32> to vector<2x8xf32>
    %c0_33 = arith.constant 0 : index
    %c0_34 = arith.constant 0 : index
    %65 = vector.load %arg13[%c0_33, %c0_34] : memref<1x1xf32, #tpu.memory_space<vmem>>, vector<1x1xf32>
    %66 = vector.broadcast %65 : vector<1x1xf32> to vector<2x8xf32>
    %67 = arith.addf %64, %66 : vector<2x8xf32>
    %c0_35 = arith.constant 0 : index
    %c0_36 = arith.constant 0 : index
    %68 = vector.load %arg3[%c0_35, %c0_36] : memref<2x8xf32, #tpu.memory_space<vmem>>, vector<2x8xf32>
    %cst_37 = arith.constant 1.000000e+00 : f32
    %69 = vector.broadcast %cst_37 : f32 to vector<2x8xf32>
    %70 = arith.subf %68, %69 : vector<2x8xf32>
    %cst_38 = arith.constant 1.000000e+09 : f32
    %71 = vector.broadcast %cst_38 : f32 to vector<2x8xf32>
    %72 = arith.mulf %70, %71 : vector<2x8xf32>
    %73 = arith.addf %67, %72 : vector<2x8xf32>
    %cst_39 = arith.constant dense<0xFF800000> : vector<2xf32>
    %74 = vector.multi_reduction <maximumf>, %73, %cst_39 [1] : vector<2x8xf32> to vector<2xf32>
    %75 = vector.shape_cast %74 : vector<2xf32> to vector<2x1xf32>
    %76 = vector.broadcast %75 : vector<2x1xf32> to vector<2x8xf32>
    %77 = arith.subf %73, %76 : vector<2x8xf32>
    %78 = math.exp %77 : vector<2x8xf32>
    %cst_40 = arith.constant dense<0.000000e+00> : vector<2xf32>
    %79 = vector.multi_reduction <add>, %78, %cst_40 [1] : vector<2x8xf32> to vector<2xf32>
    %80 = vector.shape_cast %79 : vector<2xf32> to vector<2x1xf32>
    %81 = tpu.reciprocal %80 {approx = true} : vector<2x1xf32> -> vector<2x1xf32>
    %82 = vector.broadcast %81 : vector<2x1xf32> to vector<2x8xf32>
    %83 = arith.mulf %78, %82 : vector<2x8xf32>
    %c0_41 = arith.constant 0 : index
    %c0_42 = arith.constant 0 : index
    %84 = vector.load %arg14[%c0_41, %c0_42] : memref<2x8xf32, #tpu.memory_space<vmem>>, vector<2x8xf32>
    tpu.vector_store %arg14[%c0_41, %c0_42], %83 {strides = array<i32>} : memref<2x8xf32, #tpu.memory_space<vmem>>, vector<2x8xf32>,
    return
  }
  func.func @transform_0(%arg0: i32) -> (i32, i32, i32) {
    %c0_i32 = arith.constant 0 : i32
    %c0_i32_0 = arith.constant 0 : i32
    %c0_i32_1 = arith.constant 0 : i32
    return %arg0, %c0_i32, %c0_i32_0 : i32, i32, i32
  }
  func.func @transform_1(%arg0: i32) -> (i32, i32, i32) {
    %c0_i32 = arith.constant 0 : i32
    %c0_i32_0 = arith.constant 0 : i32
    %c0_i32_1 = arith.constant 0 : i32
    return %arg0, %c0_i32, %c0_i32_0 : i32, i32, i32
  }
  func.func @transform_2(%arg0: i32) -> (i32, i32) {
    %c0_i32 = arith.constant 0 : i32
    %c0_i32_0 = arith.constant 0 : i32
    return %arg0, %c0_i32 : i32, i32
  }
  func.func @transform_3(%arg0: i32) -> (i32, i32) {
    %c0_i32 = arith.constant 0 : i32
    %c0_i32_0 = arith.constant 0 : i32
    %c0_i32_1 = arith.constant 0 : i32
    return %c0_i32, %c0_i32_0 : i32, i32
  }
  func.func @transform_4(%arg0: i32) -> (i32, i32) {
    %c0_i32 = arith.constant 0 : i32
    %c0_i32_0 = arith.constant 0 : i32
    %c0_i32_1 = arith.constant 0 : i32
    return %c0_i32, %c0_i32_0 : i32, i32
  }
  func.func @transform_5(%arg0: i32) -> (i32, i32) {
    %c0_i32 = arith.constant 0 : i32
    %c0_i32_0 = arith.constant 0 : i32
    %c0_i32_1 = arith.constant 0 : i32
    return %c0_i32, %c0_i32_0 : i32, i32
  }
  func.func @transform_6(%arg0: i32) -> (i32, i32) {
    %c0_i32 = arith.constant 0 : i32
    %c0_i32_0 = arith.constant 0 : i32
    %c0_i32_1 = arith.constant 0 : i32
    return %c0_i32, %c0_i32_0 : i32, i32
  }
  func.func @transform_7(%arg0: i32) -> (i32, i32) {
    %c0_i32 = arith.constant 0 : i32
    %c0_i32_0 = arith.constant 0 : i32
    %c0_i32_1 = arith.constant 0 : i32
    return %c0_i32, %c0_i32_0 : i32, i32
  }
  func.func @transform_8(%arg0: i32) -> (i32, i32) {
    %c0_i32 = arith.constant 0 : i32
    %c0_i32_0 = arith.constant 0 : i32
    %c0_i32_1 = arith.constant 0 : i32
    return %c0_i32, %c0_i32_0 : i32, i32
  }
  func.func @transform_9(%arg0: i32) -> (i32, i32) {
    %c0_i32 = arith.constant 0 : i32
    %c0_i32_0 = arith.constant 0 : i32
    %c0_i32_1 = arith.constant 0 : i32
    return %c0_i32, %c0_i32_0 : i32, i32
  }
  func.func @transform_10(%arg0: i32) -> (i32, i32) {
    %c0_i32 = arith.constant 0 : i32
    %c0_i32_0 = arith.constant 0 : i32
    %c0_i32_1 = arith.constant 0 : i32
    return %c0_i32, %c0_i32_0 : i32, i32
  }
  func.func @transform_11(%arg0: i32) -> (i32, i32) {
    %c0_i32 = arith.constant 0 : i32
    %c0_i32_0 = arith.constant 0 : i32
    %c0_i32_1 = arith.constant 0 : i32
    return %c0_i32, %c0_i32_0 : i32, i32
  }
  func.func @transform_12(%arg0: i32) -> (i32, i32) {
    %c0_i32 = arith.constant 0 : i32
    %c0_i32_0 = arith.constant 0 : i32
    %c0_i32_1 = arith.constant 0 : i32
    return %c0_i32, %c0_i32_0 : i32, i32
  }
  func.func @transform_13(%arg0: i32) -> (i32, i32) {
    %c0_i32 = arith.constant 0 : i32
    %c0_i32_0 = arith.constant 0 : i32
    return %arg0, %c0_i32 : i32, i32
  }
}

</mosaic_0001>

<llo_original>
// kernel: tpu_custom_call.1
$region0: #{tpu_custom_call.1}
  #allocation0 [shape = 'u32[]', space=smem, size = 0x4, offset = 0x4, fixed_abs, tag = 'smem constant byte address 0x4 - core index']
  #allocation1 [shape = 'u32[144,128]{1,0:T(1,128)}', space=vmem, size = 0x12000, scoped, tag = 'internal scratch']
  #allocation2 [shape = 'f32[1,1]{1,0:T(1,128)S(1)}', space=vmem, size = 0x200, scoped, tag = 'scoped memory for tpu_custom_call.1']
  %s0 = inlined_call_operand.vmem [shape: f32[2,1,8], index: 0, kind: input, shape index: {}]
  %s1 = inlined_call_operand.vmem [shape: f32[2,8,8], index: 1, kind: input, shape index: {}]
  %s2 = inlined_call_operand.vmem [shape: f32[2,8], index: 2, kind: input, shape index: {}]
  %s3 = inlined_call_operand.vmem [shape: f32[8,32], index: 3, kind: input, shape index: {}]
  %s4 = inlined_call_operand.vmem [shape: f32[8,32], index: 4, kind: input, shape index: {}]
  %s5 = inlined_call_operand.vmem [shape: f32[8,32], index: 5, kind: input, shape index: {}]
  %s6 = inlined_call_operand.vmem [shape: f32[1,32], index: 6, kind: input, shape index: {}]
  %s7 = inlined_call_operand.vmem [shape: f32[1,32], index: 7, kind: input, shape index: {}]
  %s8 = inlined_call_operand.vmem [shape: f32[32,16], index: 8, kind: input, shape index: {}]
  %s9 = inlined_call_operand.vmem [shape: f32[1,16], index: 9, kind: input, shape index: {}]
  %s10 = inlined_call_operand.vmem [shape: f32[1,16], index: 10, kind: input, shape index: {}]
  %s11 = inlined_call_operand.vmem [shape: f32[1,16], index: 11, kind: input, shape index: {}]
  %s12 = inlined_call_operand.<no memory space> [shape: f32[1,1], index: 12, kind: input, shape index: {}]
  %s13 = inlined_call_operand.hbm [shape: f32[2,8], index: 13, kind: output, shape index: {}]
  %s14 = sld [smem:[#allocation0]]
  $region62: #{tpu_custom_call.1} parent=0
    _
  %s16 = ssub.s32 1, %s14
  %s17 = scalar_select 0, %s16, %s14
  %v18 = vstv %s12
  %19 = vst [vmem:[#allocation2] sm:$0x1] %v18
  $region1: #{tpu_custom_call.1} parent=0
    #allocation3 [shape = 'u8[1024]{0}', space=vmem, size = 0x400, scoped, tag = 'output window, operand 0, single buffered']
    #allocation4 [shape = 's32[1]{0}', space=sflag, size = 0x4, scoped, tag = 'scoped memory for tpu_custom_call.1']
    %20 = vsyncpa [#allocation4], 0
    // Predicated region
    $region2: #{tpu_custom_call.1} parent=1 // pred_check
      _
    $region3: #{tpu_custom_call.1} parent=1 // pred_check_branch
      %22 = sbr.rel (0) target = $region5
    $region4: #{tpu_custom_call.1} parent=1 // pred_region
      _
    $region5: #{tpu_custom_call.1} parent=1 // pred_fallthru
      _
    // Predicated region
    $region6: #{tpu_custom_call.1} parent=1 // pred_check
      _
    $region7: #{tpu_custom_call.1} parent=1 // pred_check_branch
      %24 = sbr.rel (0) target = $region9
    $region8: #{tpu_custom_call.1} parent=1 // pred_region
      _
    $region9: #{tpu_custom_call.1} parent=1 // pred_fallthru
      _
    // Predicated region
    $region10: #{tpu_custom_call.1} parent=1 // pred_check
      _
    $region11: #{tpu_custom_call.1} parent=1 // pred_check_branch
      %26 = sbr.rel (0) target = $region13
    $region12: #{tpu_custom_call.1} parent=1 // pred_region
      _
    $region13: #{tpu_custom_call.1} parent=1 // pred_fallthru
      _
    // Predicated region
    $region14: #{tpu_custom_call.1} parent=1 // pred_check
      _
    $region15: #{tpu_custom_call.1} parent=1 // pred_check_branch
      %28 = sbr.rel (0) target = $region17
    $region16: #{tpu_custom_call.1} parent=1 // pred_region
      _
    $region17: #{tpu_custom_call.1} parent=1 // pred_fallthru
      _
    // Predicated region
    $region18: #{tpu_custom_call.1} parent=1 // pred_check
      _
    $region19: #{tpu_custom_call.1} parent=1 // pred_check_branch
      %30 = sbr.rel (0) target = $region21
    $region20: #{tpu_custom_call.1} parent=1 // pred_region
      _
    $region21: #{tpu_custom_call.1} parent=1 // pred_fallthru
      _
    // Predicated region
    $region22: #{tpu_custom_call.1} parent=1 // pred_check
      _
    $region23: #{tpu_custom_call.1} parent=1 // pred_check_branch
      %32 = sbr.rel (0) target = $region25
    $region24: #{tpu_custom_call.1} parent=1 // pred_region
      _
    $region25: #{tpu_custom_call.1} parent=1 // pred_fallthru
      _
    // Predicated region
    $region26: #{tpu_custom_call.1} parent=1 // pred_check
      _
    $region27: #{tpu_custom_call.1} parent=1 // pred_check_branch
      %34 = sbr.rel (0) target = $region29
    $region28: #{tpu_custom_call.1} parent=1 // pred_region
      _
    $region29: #{tpu_custom_call.1} parent=1 // pred_fallthru
      _
    // Predicated region
    $region30: #{tpu_custom_call.1} parent=1 // pred_check
      _
    $region31: #{tpu_custom_call.1} parent=1 // pred_check_branch
      %36 = sbr.rel (0) target = $region33
    $region32: #{tpu_custom_call.1} parent=1 // pred_region
      _
    $region33: #{tpu_custom_call.1} parent=1 // pred_fallthru
      _
    // Predicated region
    $region34: #{tpu_custom_call.1} parent=1 // pred_check
      _
    $region35: #{tpu_custom_call.1} parent=1 // pred_check_branch
      %38 = sbr.rel (0) target = $region37
    $region36: #{tpu_custom_call.1} parent=1 // pred_region
      _
    $region37: #{tpu_custom_call.1} parent=1 // pred_fallthru
      _
    // Predicated region
    $region38: #{tpu_custom_call.1} parent=1 // pred_check
      _
    $region39: #{tpu_custom_call.1} parent=1 // pred_check_branch
      %40 = sbr.rel (0) target = $region41
    $region40: #{tpu_custom_call.1} parent=1 // pred_region
      _
    $region41: #{tpu_custom_call.1} parent=1 // pred_fallthru
      _
    // Predicated region
    $region42: #{tpu_custom_call.1} parent=1 // pred_check
      _
    $region43: #{tpu_custom_call.1} parent=1 // pred_check_branch
      %42 = sbr.rel (0) target = $region45
    $region44: #{tpu_custom_call.1} parent=1 // pred_region
      _
    $region45: #{tpu_custom_call.1} parent=1 // pred_fallthru
      _
    // Predicated region
    $region46: #{tpu_custom_call.1} parent=1 // pred_check
      _
    $region47: #{tpu_custom_call.1} parent=1 // pred_check_branch
      %44 = sbr.rel (0) target = $region49
    $region48: #{tpu_custom_call.1} parent=1 // pred_region
      _
    $region49: #{tpu_custom_call.1} parent=1 // pred_fallthru
      _
    // Predicated region
    $region50: #{tpu_custom_call.1} parent=1 // pred_check
      _
    $region51: #{tpu_custom_call.1} parent=1 // pred_check_branch
      %46 = sbr.rel (0) target = $region53
    $region52: #{tpu_custom_call.1} parent=1 // pred_region
      _
    $region53: #{tpu_custom_call.1} parent=1 // pred_fallthru
      _
    %v47 = vld [vmem:[%s0] sm:$0x1]
    %v48 = vld [vmem:[%s0 + $0x1] sm:$0x1]
    %v49 = vld [vmem:[%s1] sm:$0xff]
    %v50 = vld [vmem:[%s1 + $0x8] sm:$0xff]
    %v51 = vld [vmem:[%s3] sm:$0xff]
    %v52 = vld [vmem:[%s6] sm:$0x1]
    %v54 = vlaneseq
    %v55 = vshrl.u32 %v54, 7
    %v56 = vsub.s32 0, %v55
    %v57 = vrot.slane %v52, %v56
    %v61 = vcombine.low %v47, %v48
    %v63 = vunpack.c.l.s4 1966171168
    %v64 = vunpack.c.0.s8 %v63
    %v65 = vlaneseq
    %v66 = vshrl.u32 %v65, 7
    %v67 = vsub.s32 %v64, %v66
    %v68 = vrot.slane %v61, %v67
    %v70 = vunpack.c.l.s4 1966171168
    %v71 = vunpack.c.0.s8 %v70
    %v72 = vlaneseq
    %v73 = vshrl.u32 %v72, 7
    %v74 = vsub.s32 %v71, %v73
    %v75 = vrot.slane %v68, %v74
    %vm76 = vcmask 64512
    %v77 = vsel %vm76, %v75, 0
    %79 = vmatprep.subr.mxu0 0.0
    %80 = vmatpush1.msra.mxu0 0.0
    %81 = vmatprep.subr.mxu0 0.0
    %82 = vmatpush1.msra.mxu0 0.0
    %83 = vmatprep.subr.mxu0 0.0
    %84 = vmatpush1.msra.mxu0 0.0
    %85 = vmatprep.subr.mxu0 0.0
    %86 = vmatpush1.msra.mxu0 0.0
    %87 = vmatprep.subr.mxu0 0.0
    %88 = vmatpush1.msra.mxu0 0.0
    %89 = vmatprep.subr.mxu0 0.0
    %90 = vmatpush1.msra.mxu0 0.0
    %91 = vmatprep.subr.mxu0 0.0
    %92 = vmatpush1.msra.mxu0 0.0
    %93 = vmatprep.subr.mxu0 0.0
    %94 = vmatpush1.msra.mxu0 0.0
    %95 = vmatprep.subr.mxu0 0.0
    %96 = vmatpush1.msra.mxu0 0.0
    %97 = vmatprep.subr.mxu0 0.0
    %98 = vmatpush1.msra.mxu0 0.0
    %99 = vmatprep.subr.mxu0 0.0
    %100 = vmatpush1.msra.mxu0 0.0
    %101 = vmatprep.subr.mxu0 0.0
    %102 = vmatpush1.msra.mxu0 0.0
    %103 = vmatprep.subr.mxu0 0.0
    %104 = vmatpush1.msra.mxu0 0.0
    %105 = vmatprep.subr.mxu0 0.0
    %106 = vmatpush1.msra.mxu0 0.0
    %107 = vmatprep.subr.mxu0 0.0
    %108 = vmatpush1.msra.mxu0 0.0
    %109 = vmatprep.subr.mxu0 0.0
    %110 = vmatpush1.msra.mxu0 %v51
    %111 = vmatprep.subr.mxu0 0.0
    %112 = vmatpush2.msra.mxu0 0.0
    %113 = vmatprep.subr.mxu0 0.0
    %114 = vmatpush2.msra.mxu0 0.0
    %115 = vmatprep.subr.mxu0 0.0
    %116 = vmatpush2.msra.mxu0 0.0
    %117 = vmatprep.subr.mxu0 0.0
    %118 = vmatpush2.msra.mxu0 0.0
    %119 = vmatprep.subr.mxu0 0.0
    %120 = vmatpush2.msra.mxu0 0.0
    %121 = vmatprep.subr.mxu0 0.0
    %122 = vmatpush2.msra.mxu0 0.0
    %123 = vmatprep.subr.mxu0 0.0
    %124 = vmatpush2.msra.mxu0 0.0
    %125 = vmatprep.subr.mxu0 0.0
    %126 = vmatpush2.msra.mxu0 0.0
    %127 = vmatprep.subr.mxu0 0.0
    %128 = vmatpush2.msra.mxu0 0.0
    %129 = vmatprep.subr.mxu0 0.0
    %130 = vmatpush2.msra.mxu0 0.0
    %131 = vmatprep.subr.mxu0 0.0
    %132 = vmatpush2.msra.mxu0 0.0
    %133 = vmatprep.subr.mxu0 0.0
    %134 = vmatpush2.msra.mxu0 0.0
    %135 = vmatprep.subr.mxu0 0.0
    %136 = vmatpush2.msra.mxu0 0.0
    %137 = vmatprep.subr.mxu0 0.0
    %138 = vmatpush2.msra.mxu0 0.0
    %139 = vmatprep.subr.mxu0 0.0
    %140 = vmatpush2.msra.mxu0 0.0
    %141 = vmatprep.subr.mxu0 0.0
    %142 = vmatpush2.msra.mxu0 0.0
    %143 = vmatprep.mubr.f32.mxu0 0.0
    %144 = vmatmul.mubr.f32.gmra.mxu0 %v77
    %v145 = vpop.f32.mrf.mxu0
    %v146 = vadd.f32 %v57, %v145
    %v147 = vpop.f32.mrf.mxu0
    %148 = vdwg.mxu0
    %v149 = vlaneseq
    %v150 = vshrl.u32 %v149, 7
    %v151 = vsub.s32 0, %v150
    %v152 = vrot.slane %v47, %v151
    %v153 = vlaneseq
    %v154 = vshrl.u32 %v153, 7
    %v155 = vsub.s32 0, %v154
    %v156 = vrot.slane %v48, %v155
    %v159 = vmul.f32 %v152, %v49
    %v160 = vmul.f32 %v156, %v50
    %v161 = vld [vmem:[%s4] sm:$0xff]
    %v162 = vld [vmem:[%s5] sm:$0xff]
    %v164 = vsel %vm76, %v159, 0
    %v167 = vsel %vm76, %v160, 0
    %169 = vmatprep.subr.mxu0 0.0
    %170 = vmatpush1.msra.mxu0 0.0
    %171 = vmatprep.subr.mxu0 0.0
    %172 = vmatpush1.msra.mxu0 0.0
    %173 = vmatprep.subr.mxu0 0.0
    %174 = vmatpush1.msra.mxu0 0.0
    %175 = vmatprep.subr.mxu0 0.0
    %176 = vmatpush1.msra.mxu0 0.0
    %177 = vmatprep.subr.mxu0 0.0
    %178 = vmatpush1.msra.mxu0 0.0
    %179 = vmatprep.subr.mxu0 0.0
    %180 = vmatpush1.msra.mxu0 0.0
    %181 = vmatprep.subr.mxu0 0.0
    %182 = vmatpush1.msra.mxu0 0.0
    %183 = vmatprep.subr.mxu0 0.0
    %184 = vmatpush1.msra.mxu0 0.0
    %185 = vmatprep.subr.mxu0 0.0
    %186 = vmatpush1.msra.mxu0 0.0
    %187 = vmatprep.subr.mxu0 0.0
    %188 = vmatpush1.msra.mxu0 0.0
    %189 = vmatprep.subr.mxu0 0.0
    %190 = vmatpush1.msra.mxu0 0.0
    %191 = vmatprep.subr.mxu0 0.0
    %192 = vmatpush1.msra.mxu0 0.0
    %193 = vmatprep.subr.mxu0 0.0
    %194 = vmatpush1.msra.mxu0 0.0
    %195 = vmatprep.subr.mxu0 0.0
    %196 = vmatpush1.msra.mxu0 0.0
    %197 = vmatprep.subr.mxu0 0.0
    %198 = vmatpush1.msra.mxu0 0.0
    %199 = vmatprep.subr.mxu0 0.0
    %200 = vmatpush1.msra.mxu0 %v162
    %201 = vmatprep.subr.mxu0 0.0
    %202 = vmatpush2.msra.mxu0 0.0
    %203 = vmatprep.subr.mxu0 0.0
    %204 = vmatpush2.msra.mxu0 0.0
    %205 = vmatprep.subr.mxu0 0.0
    %206 = vmatpush2.msra.mxu0 0.0
    %207 = vmatprep.subr.mxu0 0.0
    %208 = vmatpush2.msra.mxu0 0.0
    %209 = vmatprep.subr.mxu0 0.0
    %210 = vmatpush2.msra.mxu0 0.0
    %211 = vmatprep.subr.mxu0 0.0
    %212 = vmatpush2.msra.mxu0 0.0
    %213 = vmatprep.subr.mxu0 0.0
    %214 = vmatpush2.msra.mxu0 0.0
    %215 = vmatprep.subr.mxu0 0.0
    %216 = vmatpush2.msra.mxu0 0.0
    %217 = vmatprep.subr.mxu0 0.0
    %218 = vmatpush2.msra.mxu0 0.0
    %219 = vmatprep.subr.mxu0 0.0
    %220 = vmatpush2.msra.mxu0 0.0
    %221 = vmatprep.subr.mxu0 0.0
    %222 = vmatpush2.msra.mxu0 0.0
    %223 = vmatprep.subr.mxu0 0.0
    %224 = vmatpush2.msra.mxu0 0.0
    %225 = vmatprep.subr.mxu0 0.0
    %226 = vmatpush2.msra.mxu0 0.0
    %227 = vmatprep.subr.mxu0 0.0
    %228 = vmatpush2.msra.mxu0 0.0
    %229 = vmatprep.subr.mxu0 0.0
    %230 = vmatpush2.msra.mxu0 0.0
    %231 = vmatprep.subr.mxu0 0.0
    %232 = vmatpush2.msra.mxu0 0.0
    %233 = vmatprep.mubr.f32.mxu0 0.0
    %234 = vmatmul.mubr.f32.gmra.mxu0 %v164
    %v235 = vpop.f32.mrf.mxu0
    %v236 = vadd.f32 0.0, %v235
    %v237 = vpop.f32.mrf.mxu0
    %238 = vmatprep.mubr.f32.mxu0 0.0
    %239 = vmatmul.mubr.f32.gmra.mxu0 %v167
    %v240 = vpop.f32.mrf.mxu0
    %v241 = vadd.f32 0.0, %v240
    %v242 = vpop.f32.mrf.mxu0
    %243 = vdwg.mxu0
    %v245 = vsel %vm76, %v49, 0
    %v248 = vsel %vm76, %v50, 0
    %250 = vmatprep.subr.mxu0 0.0
    %251 = vmatpush1.msra.mxu0 0.0
    %252 = vmatprep.subr.mxu0 0.0
    %253 = vmatpush1.msra.mxu0 0.0
    %254 = vmatprep.subr.mxu0 0.0
    %255 = vmatpush1.msra.mxu0 0.0
    %256 = vmatprep.subr.mxu0 0.0
    %257 = vmatpush1.msra.mxu0 0.0
    %258 = vmatprep.subr.mxu0 0.0
    %259 = vmatpush1.msra.mxu0 0.0
    %260 = vmatprep.subr.mxu0 0.0
    %261 = vmatpush1.msra.mxu0 0.0
    %262 = vmatprep.subr.mxu0 0.0
    %263 = vmatpush1.msra.mxu0 0.0
    %264 = vmatprep.subr.mxu0 0.0
    %265 = vmatpush1.msra.mxu0 0.0
    %266 = vmatprep.subr.mxu0 0.0
    %267 = vmatpush1.msra.mxu0 0.0
    %268 = vmatprep.subr.mxu0 0.0
    %269 = vmatpush1.msra.mxu0 0.0
    %270 = vmatprep.subr.mxu0 0.0
    %271 = vmatpush1.msra.mxu0 0.0
    %272 = vmatprep.subr.mxu0 0.0
    %273 = vmatpush1.msra.mxu0 0.0
    %274 = vmatprep.subr.mxu0 0.0
    %275 = vmatpush1.msra.mxu0 0.0
    %276 = vmatprep.subr.mxu0 0.0
    %277 = vmatpush1.msra.mxu0 0.0
    %278 = vmatprep.subr.mxu0 0.0
    %279 = vmatpush1.msra.mxu0 0.0
    %280 = vmatprep.subr.mxu0 0.0
    %281 = vmatpush1.msra.mxu0 %v161
    %282 = vmatprep.subr.mxu0 0.0
    %283 = vmatpush2.msra.mxu0 0.0
    %284 = vmatprep.subr.mxu0 0.0
    %285 = vmatpush2.msra.mxu0 0.0
    %286 = vmatprep.subr.mxu0 0.0
    %287 = vmatpush2.msra.mxu0 0.0
    %288 = vmatprep.subr.mxu0 0.0
    %289 = vmatpush2.msra.mxu0 0.0
    %290 = vmatprep.subr.mxu0 0.0
    %291 = vmatpush2.msra.mxu0 0.0
    %292 = vmatprep.subr.mxu0 0.0
    %293 = vmatpush2.msra.mxu0 0.0
    %294 = vmatprep.subr.mxu0 0.0
    %295 = vmatpush2.msra.mxu0 0.0
    %296 = vmatprep.subr.mxu0 0.0
    %297 = vmatpush2.msra.mxu0 0.0
    %298 = vmatprep.subr.mxu0 0.0
    %299 = vmatpush2.msra.mxu0 0.0
    %300 = vmatprep.subr.mxu0 0.0
    %301 = vmatpush2.msra.mxu0 0.0
    %302 = vmatprep.subr.mxu0 0.0
    %303 = vmatpush2.msra.mxu0 0.0
    %304 = vmatprep.subr.mxu0 0.0
    %305 = vmatpush2.msra.mxu0 0.0
    %306 = vmatprep.subr.mxu0 0.0
    %307 = vmatpush2.msra.mxu0 0.0
    %308 = vmatprep.subr.mxu0 0.0
    %309 = vmatpush2.msra.mxu0 0.0
    %310 = vmatprep.subr.mxu0 0.0
    %311 = vmatpush2.msra.mxu0 0.0
    %312 = vmatprep.subr.mxu0 0.0
    %313 = vmatpush2.msra.mxu0 0.0
    %314 = vmatprep.mubr.f32.mxu0 0.0
    %315 = vmatmul.mubr.f32.gmra.mxu0 %v245
    %v316 = vpop.f32.mrf.mxu0
    %v317 = vadd.f32 %v236, %v316
    %v318 = vpop.f32.mrf.mxu0
    %319 = vmatprep.mubr.f32.mxu0 0.0
    %320 = vmatmul.mubr.f32.gmra.mxu0 %v248
    %v321 = vpop.f32.mrf.mxu0
    %v322 = vadd.f32 %v241, %v321
    %v323 = vpop.f32.mrf.mxu0
    %324 = vdwg.mxu0
    %v327 = vunpack.c.l.s4 1966171168
    %v328 = vunpack.c.0.s8 %v327
    %v329 = vlaneseq
    %v330 = vshrl.u32 %v329, 7
    %v331 = vsub.s32 %v328, %v330
    %v332 = vrot.slane %v146, %v331
    %v333 = vcombine.high %v332, %v332
    %v335 = vunpack.c.l.s4 1966171168
    %v336 = vunpack.c.0.s8 %v335
    %v337 = vlaneseq
    %v338 = vshrl.u32 %v337, 7
    %v339 = vsub.s32 %v336, %v338
    %v340 = vrot.slane %v332, %v339
    %v342 = vunpack.c.l.s4 1966171168
    %v343 = vunpack.c.0.s8 %v342
    %v344 = vlaneseq
    %v345 = vshrl.u32 %v344, 7
    %v346 = vsub.s32 %v343, %v345
    %v347 = vrot.slane %v333, %v346
    %v348 = vlaneseq
    %v349 = vshrl.u32 %v348, 7
    %v350 = vsub.s32 0, %v349
    %v351 = vrot.slane %v340, %v350
    %v352 = vlaneseq
    %v353 = vshrl.u32 %v352, 7
    %v354 = vsub.s32 0, %v353
    %v355 = vrot.slane %v347, %v354
    %v358 = vadd.f32 %v317, %v351
    %v359 = vadd.f32 %v322, %v355
    %v360 = vld [vmem:[%s7] sm:$0x1]
    %v361 = vxor.u32 %v358, 2147483648
    %v362 = vxor.u32 %v359, 2147483648
    %v363 = vmul.f32 %v361, 1.442695
    %v364 = vpow.pop %v363
    %v365 = vmul.f32 %v362, 1.442695
    %v366 = vpow.pop %v365
    %v367 = vadd.f32 %v364, 1.0
    %v368 = vadd.f32 %v366, 1.0
    %v369 = vrcp.pop %v367
    %v370 = vmul.f32 1.0, %v369
    %v371 = vrcp.pop %v368
    %v372 = vmul.f32 1.0, %v371
    %v373 = vsub.f32 1.0, %v360
    %v375 = vlaneseq
    %v376 = vshrl.u32 %v375, 7
    %v377 = vsub.s32 0, %v376
    %v378 = vrot.slane %v373, %v377
    %v380 = vmul.f32 %v378, %v370
    %v381 = vmul.f32 %v378, %v372
    %v383 = vlaneseq
    %v384 = vshrl.u32 %v383, 7
    %v385 = vsub.s32 0, %v384
    %v386 = vrot.slane %v360, %v385
    %v388 = vadd.f32 %v386, %v380
    %v389 = vadd.f32 %v386, %v381
    %v390 = vmul.f32 %v358, %v388
    %v391 = vmul.f32 %v359, %v389
    %v392 = vld [vmem:[%s8] sm:$0xff]
    %v393 = vld [vmem:[%s8 + $0x8] sm:$0xff]
    %v394 = vld [vmem:[%s8 + $0x10] sm:$0xff]
    %v395 = vld [vmem:[%s8 + $0x18] sm:$0xff]
    %v396 = vld [vmem:[%s9] sm:$0x1]
    %v398 = vlaneseq
    %v399 = vshrl.u32 %v398, 7
    %v400 = vsub.s32 0, %v399
    %v401 = vrot.slane %v396, %v400
    %vm403 = vcmask 261120
    %v405 = vsel %vm403, %v390, 0
    %v408 = vsel %vm403, %v391, 0
    %410 = vmatprep.subr.mxu0 0.0
    %411 = vmatpush1.msra.mxu0 0.0
    %412 = vmatprep.subr.mxu0 0.0
    %413 = vmatpush1.msra.mxu0 0.0
    %414 = vmatprep.subr.mxu0 0.0
    %415 = vmatpush1.msra.mxu0 0.0
    %416 = vmatprep.subr.mxu0 0.0
    %417 = vmatpush1.msra.mxu0 0.0
    %418 = vmatprep.subr.mxu0 0.0
    %419 = vmatpush1.msra.mxu0 0.0
    %420 = vmatprep.subr.mxu0 0.0
    %421 = vmatpush1.msra.mxu0 0.0
    %422 = vmatprep.subr.mxu0 0.0
    %423 = vmatpush1.msra.mxu0 0.0
    %424 = vmatprep.subr.mxu0 0.0
    %425 = vmatpush1.msra.mxu0 0.0
    %426 = vmatprep.subr.mxu0 0.0
    %427 = vmatpush1.msra.mxu0 0.0
    %428 = vmatprep.subr.mxu0 0.0
    %429 = vmatpush1.msra.mxu0 0.0
    %430 = vmatprep.subr.mxu0 0.0
    %431 = vmatpush1.msra.mxu0 0.0
    %432 = vmatprep.subr.mxu0 0.0
    %433 = vmatpush1.msra.mxu0 0.0
    %434 = vmatprep.subr.mxu0 0.0
    %435 = vmatpush1.msra.mxu0 %v395
    %436 = vmatprep.subr.mxu0 0.0
    %437 = vmatpush1.msra.mxu0 %v394
    %438 = vmatprep.subr.mxu0 0.0
    %439 = vmatpush1.msra.mxu0 %v393
    %440 = vmatprep.subr.mxu0 0.0
    %441 = vmatpush1.msra.mxu0 %v392
    %442 = vmatprep.subr.mxu0 0.0
    %443 = vmatpush2.msra.mxu0 0.0
    %444 = vmatprep.subr.mxu0 0.0
    %445 = vmatpush2.msra.mxu0 0.0
    %446 = vmatprep.subr.mxu0 0.0
    %447 = vmatpush2.msra.mxu0 0.0
    %448 = vmatprep.subr.mxu0 0.0
    %449 = vmatpush2.msra.mxu0 0.0
    %450 = vmatprep.subr.mxu0 0.0
    %451 = vmatpush2.msra.mxu0 0.0
    %452 = vmatprep.subr.mxu0 0.0
    %453 = vmatpush2.msra.mxu0 0.0
    %454 = vmatprep.subr.mxu0 0.0
    %455 = vmatpush2.msra.mxu0 0.0
    %456 = vmatprep.subr.mxu0 0.0
    %457 = vmatpush2.msra.mxu0 0.0
    %458 = vmatprep.subr.mxu0 0.0
    %459 = vmatpush2.msra.mxu0 0.0
    %460 = vmatprep.subr.mxu0 0.0
    %461 = vmatpush2.msra.mxu0 0.0
    %462 = vmatprep.subr.mxu0 0.0
    %463 = vmatpush2.msra.mxu0 0.0
    %464 = vmatprep.subr.mxu0 0.0
    %465 = vmatpush2.msra.mxu0 0.0
    %466 = vmatprep.subr.mxu0 0.0
    %467 = vmatpush2.msra.mxu0 0.0
    %468 = vmatprep.subr.mxu0 0.0
    %469 = vmatpush2.msra.mxu0 0.0
    %470 = vmatprep.subr.mxu0 0.0
    %471 = vmatpush2.msra.mxu0 0.0
    %472 = vmatprep.subr.mxu0 0.0
    %473 = vmatpush2.msra.mxu0 0.0
    %474 = vmatprep.mubr.f32.mxu0 0.0
    %475 = vmatmul.mubr.f32.gmra.mxu0 %v405
    %v476 = vpop.f32.mrf.mxu0
    %v477 = vadd.f32 %v401, %v476
    %v478 = vpop.f32.mrf.mxu0
    %479 = vmatprep.mubr.f32.mxu0 0.0
    %480 = vmatmul.mubr.f32.gmra.mxu0 %v408
    %v481 = vpop.f32.mrf.mxu0
    %v482 = vadd.f32 %v401, %v481
    %v483 = vpop.f32.mrf.mxu0
    %484 = vdwg.mxu0
    %v485 = vld [vmem:[%s10] sm:$0x1]
    %v486 = vxor.u32 %v477, 2147483648
    %v487 = vxor.u32 %v482, 2147483648
    %v488 = vmul.f32 %v486, 1.442695
    %v489 = vpow.pop %v488
    %v490 = vmul.f32 %v487, 1.442695
    %v491 = vpow.pop %v490
    %v492 = vadd.f32 %v489, 1.0
    %v493 = vadd.f32 %v491, 1.0
    %v494 = vrcp.pop %v492
    %v495 = vmul.f32 1.0, %v494
    %v496 = vrcp.pop %v493
    %v497 = vmul.f32 1.0, %v496
    %v498 = vsub.f32 1.0, %v485
    %v500 = vlaneseq
    %v501 = vshrl.u32 %v500, 7
    %v502 = vsub.s32 0, %v501
    %v503 = vrot.slane %v498, %v502
    %v505 = vmul.f32 %v503, %v495
    %v506 = vmul.f32 %v503, %v497
    %v508 = vlaneseq
    %v509 = vshrl.u32 %v508, 7
    %v510 = vsub.s32 0, %v509
    %v511 = vrot.slane %v485, %v510
    %v513 = vadd.f32 %v511, %v505
    %v514 = vadd.f32 %v511, %v506
    %v515 = vmul.f32 %v477, %v513
    %v516 = vmul.f32 %v482, %v514
    %v517 = vld [vmem:[%s11] sm:$0x1]
    %v519 = vlaneseq
    %v520 = vshrl.u32 %v519, 7
    %v521 = vsub.s32 0, %v520
    %v522 = vrot.slane %v517, %v521
    %v524 = vmul.f32 %v515, %v522
    %v525 = vmul.f32 %v516, %v522
    %vm526 = vcmask 130048
    %v527 = vsel %vm526, %v524, 0.0
    %528 = vadd.xlane.f32.xlu0 %v527
    %v529 = vpop.xlane.xlu0 %528
    %v530 = vsel %vm526, %v525, 0.0
    %531 = vadd.xlane.f32.xlu0 %v530
    %v532 = vpop.xlane.xlu0 %531
    %v533 = vld [vmem:[#allocation2] sm:$0x1]
    %v535 = vlaneseq
    %v536 = vshrl.u32 %v535, 7
    %v537 = vsub.s32 0, %v536
    %v538 = vrot.slane %v533, %v537
    %539 = vset.pattern.permute.xlu0 0
    %540 = vperm.xlu0 %539, %v538
    %v541 = vpop.permute.xlu0 %540
    %v543 = vadd.f32 %v529, %v541
    %v544 = vadd.f32 %v532, %v541
    %v545 = vld [vmem:[%s2] sm:$0x3]
    %v546 = vsub.f32 %v545, 1.0
    %v547 = vmul.f32 %v546, 1e+09
    %v549 = vlaneseq
    %v550 = vshrl.u32 %v549, 7
    %v551 = vsub.s32 0, %v550
    %v552 = vrot.slane %v547, %v551
    %554 = vbcast.lane.b32.xlu0 %v552, 256
    %v555 = vpop.permute.xlu0 %554
    %v556 = vlaneseq
    %v557 = vshrl.u32 %v556, 7
    %v558 = vsub.s32 1, %v557
    %v559 = vrot.slane %v547, %v558
    %561 = vbcast.lane.b32.xlu0 %v559, 256
    %v562 = vpop.permute.xlu0 %561
    %v565 = vadd.f32 %v543, %v555
    %v566 = vadd.f32 %v544, %v562
    %569 = vset.pattern.permute.xlu0 0
    %570 = vperm.xlu0 %569, %v565
    %v571 = vpop.permute.xlu0 %570
    %572 = vset.pattern.permute.xlu0 0
    %573 = vperm.xlu0 %572, %v566
    %v574 = vpop.permute.xlu0 %573
    %v575 = vlaneseq
    %v576 = vand.u32 %v575, 127
    %v577 = vlaneseq
    %v578 = vshrl.u32 %v577, 7
    %v579 = vsub.s32 %v576, %v578
    %v580 = vrot.slane %v571, %v579
    %v581 = vlaneseq
    %v582 = vshrl.u32 %v581, 7
    %v583 = vsub.s32 %v576, %v582
    %v584 = vrot.slane %v574, %v583
    %vm585 = vcmask 1041409
    %v586 = vsel %vm585, %v584, %v580
    %vm588 = vcmask 58368
    %v589 = vsel %vm588, %v586, -inf
    %590 = vmax.xlane.f32.xlu0 %v589
    %v591 = vpop.xlane.xlu0 %590
    %v593 = vlaneseq
    %v594 = vshrl.u32 %v593, 7
    %v595 = vsub.s32 0, %v594
    %v596 = vrot.slane %v591, %v595
    %v597 = vlaneseq
    %v598 = vshrl.u32 %v597, 7
    %v599 = vsub.s32 1, %v598
    %v600 = vrot.slane %v591, %v599
    %v603 = vsub.f32 %v565, %v596
    %v604 = vsub.f32 %v566, %v600
    %v605 = vmul.f32 %v603, 1.442695
    %v606 = vpow.pop %v605
    %v607 = vmul.f32 %v604, 1.442695
    %v608 = vpow.pop %v607
    %611 = vset.pattern.permute.xlu0 0
    %612 = vperm.xlu0 %611, %v606
    %v613 = vpop.permute.xlu0 %612
    %614 = vset.pattern.permute.xlu0 0
    %615 = vperm.xlu0 %614, %v608
    %v616 = vpop.permute.xlu0 %615
    %v617 = vlaneseq
    %v618 = vshrl.u32 %v617, 7
    %v619 = vsub.s32 %v576, %v618
    %v620 = vrot.slane %v613, %v619
    %v621 = vlaneseq
    %v622 = vshrl.u32 %v621, 7
    %v623 = vsub.s32 %v576, %v622
    %v624 = vrot.slane %v616, %v623
    %v625 = vsel %vm585, %v624, %v620
    %v627 = vsel %vm588, %v625, 0.0
    %628 = vadd.xlane.f32.xlu0 %v627
    %v629 = vpop.xlane.xlu0 %628
    %v630 = vrcp.pop %v629
    %v632 = vlaneseq
    %v633 = vshrl.u32 %v632, 7
    %v634 = vsub.s32 0, %v633
    %v635 = vrot.slane %v630, %v634
    %v636 = vlaneseq
    %v637 = vshrl.u32 %v636, 7
    %v638 = vsub.s32 1, %v637
    %v639 = vrot.slane %v630, %v638
    %v642 = vmul.f32 %v606, %v635
    %v643 = vmul.f32 %v608, %v639
    %646 = vset.pattern.permute.xlu0 0
    %647 = vperm.xlu0 %646, %v642
    %v648 = vpop.permute.xlu0 %647
    %649 = vset.pattern.permute.xlu0 0
    %650 = vperm.xlu0 %649, %v643
    %v651 = vpop.permute.xlu0 %650
    %v652 = vlaneseq
    %v653 = vshrl.u32 %v652, 7
    %v654 = vsub.s32 %v576, %v653
    %v655 = vrot.slane %v648, %v654
    %v656 = vlaneseq
    %v657 = vshrl.u32 %v656, 7
    %v658 = vsub.s32 %v576, %v657
    %v659 = vrot.slane %v651, %v658
    %v660 = vsel %vm585, %v659, %v655
    %662 = vst.msk [vmem:[#allocation3] sm:$0x3] %vm588, %v660
    // Predicated region
    $region54: #{tpu_custom_call.1} parent=1 // pred_check
      _
    $region55: #{tpu_custom_call.1} parent=1 // pred_check_branch
      %664 = sbr.rel (0) target = $region57
    $region56: #{tpu_custom_call.1} parent=1 // pred_region
      %s666 = ssub.s32 32, 32
      %667 = vsyncadd [#allocation4], %s666
      %s669 = sshll.u32 [#allocation3], 4
      %s670 = int_to_ptr.vmem [resolvable:$true] %s669
      %672 = dma.vmem_to_hbm [thread:$0]  %s670, 32, %s13, [#allocation4]
    $region57: #{tpu_custom_call.1} parent=1 // pred_fallthru
      _
    // Predicated region
    $region58: #{tpu_custom_call.1} parent=1 // pred_check
      _
    $region59: #{tpu_custom_call.1} parent=1 // pred_check_branch
      %674 = sbr.rel (0) target = $region61
    $region60: #{tpu_custom_call.1} parent=1 // pred_region
      %675 = dma.done [#allocation4], 32
    $region61: #{tpu_custom_call.1} parent=1 // pred_fallthru
      _
    %676 = vsyncpa [#allocation4], 1

</llo_original>
